<compile_context>
chip_gen: v5e
topology: v5e:2x2
jax: 0.10.0
libtpu: 0.0.40
codegen_flags: <defaults>
</compile_context>

<pallas_src>
import functools

import jax
import jax.numpy as jnp
from jax.experimental import pallas as pl
from jax.experimental.pallas import tpu as pltpu

_LANE = 128
_BF16_SUBLANE = 16  # bf16 packs 16 rows per sublane tile


def _round_up(x, m):
    return ((x + m - 1) // m) * m


def _choose_tm(batch, target=512):
    """Batch tile: multiple of 16 (bf16 tiling); >= 2 grid steps when batch allows so
    ("parallel",) can shard across both v7x TensorCores.  On v5e/v6e (1 TC, 128 MiB
    VMEM) pass tm=1024..2048 explicitly for very large batches."""
    half = max((batch + 1) // 2, 1)
    return max(_BF16_SUBLANE,
               min(_round_up(target, _BF16_SUBLANE), _round_up(half, _BF16_SUBLANE)))


def _resident_spec(shape):
    """Full-array block with a constant index_map -> DMA'd once, stays VMEM-resident."""
    return pl.BlockSpec(shape, lambda i: (0, 0))


def _block_diag(a, b):
    m1, n1 = a.shape
    m2, n2 = b.shape
    out = jnp.zeros((m1 + m2, n1 + n2), a.dtype)
    return out.at[:m1, :n1].set(a).at[m1:, n1:].set(b)


def _as_bf16(*arrs):
    return tuple(a.astype(jnp.bfloat16) for a in arrs)


# ---------------------------------------------------------------------------
# Kernels
# ---------------------------------------------------------------------------
def _trunk(x, w1_ref, b1_ref, w2_ref, b2_ref, w3_ref, b3_ref):
    """feature_extractor: (Linear -> ReLU) x 3.  bf16 operands, f32 MXU accumulation."""
    h = jnp.maximum(
        jnp.dot(x, w1_ref[...], preferred_element_type=jnp.float32) + b1_ref[...], 0.0)
    h = jnp.maximum(
        jnp.dot(h.astype(jnp.bfloat16), w2_ref[...],
                preferred_element_type=jnp.float32) + b2_ref[...], 0.0)
    h = jnp.maximum(
        jnp.dot(h.astype(jnp.bfloat16), w3_ref[...],
                preferred_element_type=jnp.float32) + b3_ref[...], 0.0)
    return h.astype(jnp.bfloat16)


def _sigmoid(x):
    # exp goes to the EUP; approx reciprocal stays on the EUP slot (vrcp) instead of
    # a VPU divide sequence.
    return pl.reciprocal(1.0 + jnp.exp(-x), approx=True)


def _mappo_kernel(apply_sigmoid,
                  x_ref, w1_ref, b1_ref, w2_ref, b2_ref, w3_ref, b3_ref,
                  wh_ref, bh_ref, o_ref):
    """Single-network forward (MultiBinary actor OR critic value head)."""
    h = _trunk(x_ref[...], w1_ref, b1_ref, w2_ref, b2_ref, w3_ref, b3_ref)
    out = jnp.dot(h, wh_ref[...], preferred_element_type=jnp.float32) + bh_ref[...]
    if apply_sigmoid:
        out = _sigmoid(out)
    o_ref[...] = out.astype(o_ref.dtype)


def _mappo_fused_kernel(x_ref, w1_ref, b1_ref, w2_ref, b2_ref, w3_ref, b3_ref,
                        wh_ref, bh_ref, mask_ref, o_ref):
    """Fused actor+critic: block-diagonally packed trunk (3 matmuls) + 1 head matmul.
    Output slab: actor sigmoid probs in lanes [0:n_actions], critic value in lane
    n_actions, zeros elsewhere (padded lanes sliced off in the wrapper)."""
    h = _trunk(x_ref[...], w1_ref, b1_ref, w2_ref, b2_ref, w3_ref, b3_ref)
    logits = jnp.dot(h, wh_ref[...], preferred_element_type=jnp.float32) + bh_ref[...]
    sig = _sigmoid(logits)
    mask = mask_ref[...]                     # (1, out_pad) f32: 1.0 on actor lanes
    out = logits + mask * (sig - logits)     # sigmoid on actor lanes, identity elsewhere
    o_ref[...] = out.astype(o_ref.dtype)


# ---------------------------------------------------------------------------
# pallas_call wrapper
# ---------------------------------------------------------------------------
def _pallas_forward(kernel, obs_bf16, ordered, out_pad, tm, flops, transcendentals):
    batch, obs_dim = obs_bf16.shape
    grid = (pl.cdiv(batch, tm),)
    bytes_accessed = int(obs_bf16.size) * 2 + batch * out_pad * 2 + sum(
        int(p.size) * int(p.dtype.itemsize) for p in ordered)
    in_specs = [pl.BlockSpec((tm, obs_dim), lambda i: (i, 0))] + [
        _resident_spec(p.shape) for p in ordered]
    return pl.pallas_call(
        kernel,
        out_shape=jax.ShapeDtypeStruct((batch, out_pad), jnp.bfloat16),
        grid=grid,
        in_specs=in_specs,
        out_specs=pl.BlockSpec((tm, out_pad), lambda i: (i, 0)),
        compiler_params=pltpu.CompilerParams(dimension_semantics=("parallel",)),
        cost_estimate=pl.CostEstimate(flops=int(flops),
                                      transcendentals=int(transcendentals),
                                      bytes_accessed=int(bytes_accessed)),
    )(obs_bf16, *ordered)


# ---------------------------------------------------------------------------
# Public wrappers
# ---------------------------------------------------------------------------
def mappo_forward(obs, params, head_mode, *, tm=None):
    """Single MAPPONetwork forward (== MAPPONetwork.forward for one module).
    head_mode: 'sigmoid' -> MultiBinary actor head; 'identity' -> critic value head."""
    assert head_mode in ("identity", "sigmoid")
    batch, obs_dim = obs.shape
    out_dim = params["wh"].shape[1]
    out_pad = _round_up(out_dim, _LANE)
    tm = _choose_tm(batch) if tm is None else tm

    # Zero-pad the head to a lane-dense (>=128-wide) slab for unmasked stores.
    wh = jnp.zeros((params["wh"].shape[0], out_pad), jnp.float32).at[:, :out_dim].set(
        params["wh"])
    bh = jnp.zeros((1, out_pad), jnp.float32).at[:, :out_dim].set(params["bh"])
    ordered = _as_bf16(params["w1"], params["b1"], params["w2"], params["b2"],
                       params["w3"], params["b3"], wh, bh)

    hidden = params["w1"].shape[1]
    h2 = params["w3"].shape[1]
    flops = 2 * batch * (obs_dim * hidden + hidden * hidden + hidden * h2 + h2 * out_pad)
    transcend = batch * out_pad if head_mode == "sigmoid" else 0

    out = _pallas_forward(functools.partial(_mappo_kernel, head_mode == "sigmoid"),
                          obs.astype(jnp.bfloat16), ordered, out_pad, tm, flops,
                          transcend)
    return out[:, :out_dim].astype(jnp.float32)


def mappo_actor_critic_forward(obs, actor_params, critic_params, *, tm=None):
    """Fused actor (MultiBinary, sigmoid) + critic (value) forward: one launch, one obs
    DMA, one block-diagonally packed trunk, one shared lane-dense head slab."""
    batch, obs_dim = obs.shape
    n_actions = actor_params["wh"].shape[1]
    assert critic_params["wh"].shape[1] == 1
    out_pad = _round_up(n_actions + 1, _LANE)
    tm = _choose_tm(batch) if tm is None else tm

    # Pack actor/critic trunks block-diagonally -> a single 2x-wide trunk.
    w1 = jnp.concatenate([actor_params["w1"], critic_params["w1"]], axis=1)
    b1 = jnp.concatenate([actor_params["b1"], critic_params["b1"]], axis=1)
    w2 = _block_diag(actor_params["w2"], critic_params["w2"])
    b2 = jnp.concatenate([actor_params["b2"], critic_params["b2"]], axis=1)
    w3 = _block_diag(actor_params["w3"], critic_params["w3"])
    b3 = jnp.concatenate([actor_params["b3"], critic_params["b3"]], axis=1)

    # Shared head slab: actor logits -> lanes [0:n_actions], critic value -> lane n_actions.
    h2 = actor_params["w3"].shape[1]
    wh = jnp.zeros((2 * h2, out_pad), jnp.float32)
    wh = wh.at[:h2, :n_actions].set(actor_params["wh"])
    wh = wh.at[h2:, n_actions:n_actions + 1].set(critic_params["wh"])
    bh = jnp.zeros((1, out_pad), jnp.float32)
    bh = bh.at[:, :n_actions].set(actor_params["bh"])
    bh = bh.at[:, n_actions:n_actions + 1].set(critic_params["bh"])

    ordered = _as_bf16(w1, b1, w2, b2, w3, b3, wh, bh)
    mask = jnp.zeros((1, out_pad), jnp.float32).at[:, :n_actions].set(1.0)

    hidden = actor_params["w1"].shape[1]
    flops = 2 * batch * (obs_dim * 2 * hidden + (2 * hidden) ** 2
                         + 2 * hidden * 2 * h2 + 2 * h2 * out_pad)
    transcend = batch * out_pad

    out = _pallas_forward(_mappo_fused_kernel, obs.astype(jnp.bfloat16),
                          ordered + (mask,), out_pad, tm, flops, transcend)
    actor_out = out[:, :n_actions].astype(jnp.float32)
    critic_out = out[:, n_actions:n_actions + 1].astype(jnp.float32)
    return actor_out, critic_out


# ---------------------------------------------------------------------------
# Parameters & pure-JAX reference
# ---------------------------------------------------------------------------
def init_params(key, obs_dim, hidden_dim, head_out_dim):
    """Deterministic synthetic parameters (shapes match the nn.Linear layers)."""
    ks = jax.random.split(key, 8)
    h2 = hidden_dim // 2

    def lin(kw, kb, fan_in, fan_out):
        scale = 1.0 / jnp.sqrt(jnp.float32(fan_in))
        w = jax.random.uniform(kw, (fan_in, fan_out), jnp.float32, -scale, scale)
        b = jax.random.uniform(kb, (1, fan_out), jnp.float32, -scale, scale)
        return w, b

    w1, b1 = lin(ks[0], ks[1], obs_dim, hidden_dim)
    w2, b2 = lin(ks[2], ks[3], hidden_dim, hidden_dim)
    w3, b3 = lin(ks[4], ks[5], hidden_dim, h2)
    wh, bh = lin(ks[6], ks[7], h2, head_out_dim)
    return dict(w1=w1, b1=b1, w2=w2, b2=b2, w3=w3, b3=b3, wh=wh, bh=bh)


def reference_forward(obs, p, head_mode):
    h = jnp.maximum(obs @ p["w1"] + p["b1"], 0.0)
    h = jnp.maximum(h @ p["w2"] + p["b2"], 0.0)
    h = jnp.maximum(h @ p["w3"] + p["b3"], 0.0)
    out = h @ p["wh"] + p["bh"]
    if head_mode == "sigmoid":
        out = jax.nn.sigmoid(out)
    return out


if __name__ == "__main__":
    key = jax.random.PRNGKey(0)
    k_obs, k_actor, k_critic = jax.random.split(key, 3)

    batch = 100          # deliberately NOT a multiple of the batch tile -> ragged last block
    obs_dim = 16
    hidden_dim = 32      # feature_extractor: 16 -> 32 -> 32 -> 16
    n_actions = 6        # MultiBinary(n=6) actor head

    obs = jax.random.normal(k_obs, (batch, obs_dim), jnp.float32)
    actor_params = init_params(k_actor, obs_dim, hidden_dim, n_actions)
    critic_params = init_params(k_critic, obs_dim, hidden_dim, 1)

    # Fused actor + critic (one launch, shared obs DMA, packed block-diagonal trunk).
    actor_out, critic_out = mappo_actor_critic_forward(obs, actor_params, critic_params)
    jax.block_until_ready((actor_out, critic_out))

    # Single-network paths (matches MAPPONetwork.forward for each module separately).
    actor_only = mappo_forward(obs, actor_params, "sigmoid")
    critic_only = mappo_forward(obs, critic_params, "identity")
    jax.block_until_ready((actor_only, critic_only))

    # Correctness vs. a pure-JAX f32 reference (kernel uses bf16 operands / f32 accum
    # and approx reciprocal, so tolerances are bf16-level).
    ref_actor = reference_forward(obs, actor_params, "sigmoid")
    ref_critic = reference_forward(obs, critic_params, "identity")

    assert actor_out.shape == (batch, n_actions)
    assert critic_out.shape == (batch, 1)
    tol = dict(atol=2e-2, rtol=2e-2)
    assert jnp.allclose(actor_out, ref_actor, **tol)
    assert jnp.allclose(critic_out, ref_critic, **tol)
    assert jnp.allclose(actor_only, ref_actor, **tol)
    assert jnp.allclose(critic_only, ref_critic, **tol)

    print("KERNEL_OK")
</pallas_src>

<mosaic_0001>
module attributes {stable_mosaic.version = 11 : i64} {
  func.func @_mappo_fused_kernel(%arg0: i32, %arg1: memref<64x16xbf16, #tpu.memory_space<vmem>>, %arg2: memref<16x64xbf16, #tpu.memory_space<vmem>>, %arg3: memref<1x64xbf16, #tpu.memory_space<vmem>>, %arg4: memref<64x64xbf16, #tpu.memory_space<vmem>>, %arg5: memref<1x64xbf16, #tpu.memory_space<vmem>>, %arg6: memref<64x32xbf16, #tpu.memory_space<vmem>>, %arg7: memref<1x32xbf16, #tpu.memory_space<vmem>>, %arg8: memref<32x128xbf16, #tpu.memory_space<vmem>>, %arg9: memref<1x128xbf16, #tpu.memory_space<vmem>>, %arg10: memref<1x128xf32, #tpu.memory_space<vmem>>, %arg11: memref<64x128xbf16, #tpu.memory_space<vmem>>) attributes {dimension_semantics = [#tpu.dimension_semantics<parallel>], iteration_bounds = array<i64: 2>, scalar_prefetch = 0 : i64, scratch_operands = 0 : i64, tpu.core_type = #tpu.core_type<tc>, window_params = [{transform_indices = @transform_0, window_bounds = array<i64: 64, 16>}, {pipeline_mode = #tpu.pipeline_mode<synchronous>, transform_indices = @transform_1, window_bounds = array<i64: 16, 64>}, {pipeline_mode = #tpu.pipeline_mode<synchronous>, transform_indices = @transform_2, window_bounds = array<i64: 1, 64>}, {pipeline_mode = #tpu.pipeline_mode<synchronous>, transform_indices = @transform_3, window_bounds = array<i64: 64, 64>}, {pipeline_mode = #tpu.pipeline_mode<synchronous>, transform_indices = @transform_4, window_bounds = array<i64: 1, 64>}, {pipeline_mode = #tpu.pipeline_mode<synchronous>, transform_indices = @transform_5, window_bounds = array<i64: 64, 32>}, {pipeline_mode = #tpu.pipeline_mode<synchronous>, transform_indices = @transform_6, window_bounds = array<i64: 1, 32>}, {pipeline_mode = #tpu.pipeline_mode<synchronous>, transform_indices = @transform_7, window_bounds = array<i64: 32, 128>}, {pipeline_mode = #tpu.pipeline_mode<synchronous>, transform_indices = @transform_8, window_bounds = array<i64: 1, 128>}, {pipeline_mode = #tpu.pipeline_mode<synchronous>, transform_indices = @transform_9, window_bounds = array<i64: 1, 128>}, {transform_indices = @transform_10, window_bounds = array<i64: 64, 128>}]} {
    %c0 = arith.constant 0 : index
    %c0_0 = arith.constant 0 : index
    %0 = vector.load %arg1[%c0, %c0_0] : memref<64x16xbf16, #tpu.memory_space<vmem>>, vector<64x16xbf16>
    %c0_1 = arith.constant 0 : index
    %c0_2 = arith.constant 0 : index
    %1 = vector.load %arg2[%c0_1, %c0_2] : memref<16x64xbf16, #tpu.memory_space<vmem>>, vector<16x64xbf16>
    %cst = arith.constant dense<0.000000e+00> : vector<64x64xf32>
    %2 = tpu.matmul %0, %1, %cst {dimension_numbers = #tpu.dot_dimension_numbers<[1], [0], [0], [1], [0, 0, 1, 1], [], []>} : vector<64x16xbf16>, vector<16x64xbf16>, vector<64x64xf32> -> vector<64x64xf32>
    %c0_3 = arith.constant 0 : index
    %c0_4 = arith.constant 0 : index
    %3 = vector.load %arg3[%c0_3, %c0_4] : memref<1x64xbf16, #tpu.memory_space<vmem>>, vector<1x64xbf16>
    %4 = arith.extf %3 : vector<1x64xbf16> to vector<1x64xf32>
    %5 = vector.broadcast %4 : vector<1x64xf32> to vector<64x64xf32>
    %6 = arith.addf %2, %5 : vector<64x64xf32>
    %cst_5 = arith.constant 0.000000e+00 : f32
    %7 = vector.broadcast %cst_5 : f32 to vector<64x64xf32>
    %8 = arith.maximumf %6, %7 : vector<64x64xf32>
    %9 = arith.truncf %8 : vector<64x64xf32> to vector<64x64xbf16>
    %c0_6 = arith.constant 0 : index
    %c0_7 = arith.constant 0 : index
    %10 = vector.load %arg4[%c0_6, %c0_7] : memref<64x64xbf16, #tpu.memory_space<vmem>>, vector<64x64xbf16>
    %cst_8 = arith.constant dense<0.000000e+00> : vector<64x64xf32>
    %11 = tpu.matmul %9, %10, %cst_8 {dimension_numbers = #tpu.dot_dimension_numbers<[1], [0], [0], [1], [0, 0, 1, 1], [], []>} : vector<64x64xbf16>, vector<64x64xbf16>, vector<64x64xf32> -> vector<64x64xf32>
    %c0_9 = arith.constant 0 : index
    %c0_10 = arith.constant 0 : index
    %12 = vector.load %arg5[%c0_9, %c0_10] : memref<1x64xbf16, #tpu.memory_space<vmem>>, vector<1x64xbf16>
    %13 = arith.extf %12 : vector<1x64xbf16> to vector<1x64xf32>
    %14 = vector.broadcast %13 : vector<1x64xf32> to vector<64x64xf32>
    %15 = arith.addf %11, %14 : vector<64x64xf32>
    %cst_11 = arith.constant 0.000000e+00 : f32
    %16 = vector.broadcast %cst_11 : f32 to vector<64x64xf32>
    %17 = arith.maximumf %15, %16 : vector<64x64xf32>
    %18 = arith.truncf %17 : vector<64x64xf32> to vector<64x64xbf16>
    %c0_12 = arith.constant 0 : index
    %c0_13 = arith.constant 0 : index
    %19 = vector.load %arg6[%c0_12, %c0_13] : memref<64x32xbf16, #tpu.memory_space<vmem>>, vector<64x32xbf16>
    %cst_14 = arith.constant dense<0.000000e+00> : vector<64x32xf32>
    %20 = tpu.matmul %18, %19, %cst_14 {dimension_numbers = #tpu.dot_dimension_numbers<[1], [0], [0], [1], [0, 0, 1, 1], [], []>} : vector<64x64xbf16>, vector<64x32xbf16>, vector<64x32xf32> -> vector<64x32xf32>
    %c0_15 = arith.constant 0 : index
    %c0_16 = arith.constant 0 : index
    %21 = vector.load %arg7[%c0_15, %c0_16] : memref<1x32xbf16, #tpu.memory_space<vmem>>, vector<1x32xbf16>
    %22 = arith.extf %21 : vector<1x32xbf16> to vector<1x32xf32>
    %23 = vector.broadcast %22 : vector<1x32xf32> to vector<64x32xf32>
    %24 = arith.addf %20, %23 : vector<64x32xf32>
    %cst_17 = arith.constant 0.000000e+00 : f32
    %25 = vector.broadcast %cst_17 : f32 to vector<64x32xf32>
    %26 = arith.maximumf %24, %25 : vector<64x32xf32>
    %27 = arith.truncf %26 : vector<64x32xf32> to vector<64x32xbf16>
    %c0_18 = arith.constant 0 : index
    %c0_19 = arith.constant 0 : index
    %28 = vector.load %arg8[%c0_18, %c0_19] : memref<32x128xbf16, #tpu.memory_space<vmem>>, vector<32x128xbf16>
    %cst_20 = arith.constant dense<0.000000e+00> : vector<64x128xf32>
    %29 = tpu.matmul %27, %28, %cst_20 {dimension_numbers = #tpu.dot_dimension_numbers<[1], [0], [0], [1], [0, 0, 1, 1], [], []>} : vector<64x32xbf16>, vector<32x128xbf16>, vector<64x128xf32> -> vector<64x128xf32>
    %c0_21 = arith.constant 0 : index
    %c0_22 = arith.constant 0 : index
    %30 = vector.load %arg9[%c0_21, %c0_22] : memref<1x128xbf16, #tpu.memory_space<vmem>>, vector<1x128xbf16>
    %31 = arith.extf %30 : vector<1x128xbf16> to vector<1x128xf32>
    %32 = vector.broadcast %31 : vector<1x128xf32> to vector<64x128xf32>
    %33 = arith.addf %29, %32 : vector<64x128xf32>
    %cst_23 = arith.constant 0.000000e+00 : f32
    %34 = vector.broadcast %cst_23 : f32 to vector<64x128xf32>
    %35 = arith.subf %34, %33 : vector<64x128xf32>
    %36 = math.exp %35 : vector<64x128xf32>
    %cst_24 = arith.constant 1.000000e+00 : f32
    %37 = vector.broadcast %cst_24 : f32 to vector<64x128xf32>
    %38 = arith.addf %37, %36 : vector<64x128xf32>
    %39 = tpu.reciprocal %38 {approx = true} : vector<64x128xf32> -> vector<64x128xf32>
    %c0_25 = arith.constant 0 : index
    %c0_26 = arith.constant 0 : index
    %40 = vector.load %arg10[%c0_25, %c0_26] : memref<1x128xf32, #tpu.memory_space<vmem>>, vector<1x128xf32>
    %41 = arith.subf %39, %33 : vector<64x128xf32>
    %42 = vector.broadcast %40 : vector<1x128xf32> to vector<64x128xf32>
    %43 = arith.mulf %42, %41 : vector<64x128xf32>
    %44 = arith.addf %33, %43 : vector<64x128xf32>
    %45 = arith.truncf %44 : vector<64x128xf32> to vector<64x128xbf16>
    %c0_27 = arith.constant 0 : index
    %c0_28 = arith.constant 0 : index
    %46 = vector.load %arg11[%c0_27, %c0_28] : memref<64x128xbf16, #tpu.memory_space<vmem>>, vector<64x128xbf16>
    tpu.vector_store %arg11[%c0_27, %c0_28], %45 {strides = array<i32>} : memref<64x128xbf16, #tpu.memory_space<vmem>>, vector<64x128xbf16>,
    return
  }
  func.func @transform_0(%arg0: i32) -> (i32, i32) {
    %c0_i32 = arith.constant 0 : i32
    %c0_i32_0 = arith.constant 0 : i32
    return %arg0, %c0_i32 : i32, i32
  }
  func.func @transform_1(%arg0: i32) -> (i32, i32) {
    %c0_i32 = arith.constant 0 : i32
    %c0_i32_0 = arith.constant 0 : i32
    %c0_i32_1 = arith.constant 0 : i32
    return %c0_i32, %c0_i32_0 : i32, i32
  }
  func.func @transform_2(%arg0: i32) -> (i32, i32) {
    %c0_i32 = arith.constant 0 : i32
    %c0_i32_0 = arith.constant 0 : i32
    %c0_i32_1 = arith.constant 0 : i32
    return %c0_i32, %c0_i32_0 : i32, i32
  }
  func.func @transform_3(%arg0: i32) -> (i32, i32) {
    %c0_i32 = arith.constant 0 : i32
    %c0_i32_0 = arith.constant 0 : i32
    %c0_i32_1 = arith.constant 0 : i32
    return %c0_i32, %c0_i32_0 : i32, i32
  }
  func.func @transform_4(%arg0: i32) -> (i32, i32) {
    %c0_i32 = arith.constant 0 : i32
    %c0_i32_0 = arith.constant 0 : i32
    %c0_i32_1 = arith.constant 0 : i32
    return %c0_i32, %c0_i32_0 : i32, i32
  }
  func.func @transform_5(%arg0: i32) -> (i32, i32) {
    %c0_i32 = arith.constant 0 : i32
    %c0_i32_0 = arith.constant 0 : i32
    %c0_i32_1 = arith.constant 0 : i32
    return %c0_i32, %c0_i32_0 : i32, i32
  }
  func.func @transform_6(%arg0: i32) -> (i32, i32) {
    %c0_i32 = arith.constant 0 : i32
    %c0_i32_0 = arith.constant 0 : i32
    %c0_i32_1 = arith.constant 0 : i32
    return %c0_i32, %c0_i32_0 : i32, i32
  }
  func.func @transform_7(%arg0: i32) -> (i32, i32) {
    %c0_i32 = arith.constant 0 : i32
    %c0_i32_0 = arith.constant 0 : i32
    %c0_i32_1 = arith.constant 0 : i32
    return %c0_i32, %c0_i32_0 : i32, i32
  }
  func.func @transform_8(%arg0: i32) -> (i32, i32) {
    %c0_i32 = arith.constant 0 : i32
    %c0_i32_0 = arith.constant 0 : i32
    %c0_i32_1 = arith.constant 0 : i32
    return %c0_i32, %c0_i32_0 : i32, i32
  }
  func.func @transform_9(%arg0: i32) -> (i32, i32) {
    %c0_i32 = arith.constant 0 : i32
    %c0_i32_0 = arith.constant 0 : i32
    %c0_i32_1 = arith.constant 0 : i32
    return %c0_i32, %c0_i32_0 : i32, i32
  }
  func.func @transform_10(%arg0: i32) -> (i32, i32) {
    %c0_i32 = arith.constant 0 : i32
    %c0_i32_0 = arith.constant 0 : i32
    return %arg0, %c0_i32 : i32, i32
  }
}

</mosaic_0001>

<llo_original>
// kernel: tpu_custom_call.1
$region0: #{tpu_custom_call.1}
  #allocation0 [shape = 'u32[]', space=smem, size = 0x4, offset = 0x4, fixed_abs, tag = 'smem constant byte address 0x4 - core index']
  #allocation1 [shape = 'u32[72,128]{1,0:T(1,128)}', space=vmem, size = 0x9000, scoped, tag = 'internal scratch']
  %s0 = inlined_call_operand.vmem [shape: bf16[100,16], index: 0, kind: input, shape index: {}]
  %s1 = inlined_call_operand.vmem [shape: bf16[16,64], index: 1, kind: input, shape index: {}]
  %s2 = inlined_call_operand.vmem [shape: bf16[1,64], index: 2, kind: input, shape index: {}]
  %s3 = inlined_call_operand.vmem [shape: bf16[64,64], index: 3, kind: input, shape index: {}]
  %s4 = inlined_call_operand.vmem [shape: bf16[1,64], index: 4, kind: input, shape index: {}]
  %s5 = inlined_call_operand.vmem [shape: bf16[64,32], index: 5, kind: input, shape index: {}]
  %s6 = inlined_call_operand.vmem [shape: bf16[1,32], index: 6, kind: input, shape index: {}]
  %s7 = inlined_call_operand.vmem [shape: bf16[32,128], index: 7, kind: input, shape index: {}]
  %s8 = inlined_call_operand.vmem [shape: bf16[1,128], index: 8, kind: input, shape index: {}]
  %s9 = inlined_call_operand.vmem [shape: f32[1,128], index: 9, kind: input, shape index: {}]
  %s10 = inlined_call_operand.hbm [shape: bf16[100,128], index: 10, kind: output, shape index: {}]
  %s11 = sld [smem:[#allocation0]]
  $region73: #{tpu_custom_call.1} parent=0
    _
  %s13 = ssub.s32 1, %s11
  %s14 = scalar_select 0, %s13, %s11
  $region1: #{tpu_custom_call.1} parent=0
    #allocation2 [shape = 'u8[32768]{0}', space=vmem, size = 0x8000, scoped, tag = 'output window, operand 0']
    #allocation3 [shape = 's32[2]{0}', space=sflag, size = 0x8, scoped, tag = 'scoped memory for tpu_custom_call.1']
    %15 = vsyncpa [#allocation3], 0
    %s16 = scalar_lea.sflag [#allocation3], 1
    %17 = vsyncpa %s16, 0
    loop: start=0, step=1, limit=4
    $region2: #{tpu_custom_call.1} parent=1 // loop_pre_header
      _
    $region3: #{tpu_custom_call.1} parent=1 // loop_header
      %s19 = sphi 0, %s23
      %p20 = scmp.ge.s32.totalorder %s19, 4
      %s29 = sphi 0, %s31
      %s32 = sphi 0, %s29
      %s33 = sphi 0, %s32
      %s49 = sphi 0, %s33
      %s53 = sphi 0, %s53
      %s55 = sphi 0, %s53
      %s56 = sphi 0, %s55
      %s70 = sphi 0, %s56
      %s74 = sphi 0, %s74
      %s76 = sphi 0, %s74
      %s77 = sphi 0, %s76
      %s91 = sphi 0, %s77
      %s95 = sphi 0, %s95
      %s97 = sphi 0, %s95
      %s98 = sphi 0, %s97
      %s112 = sphi 0, %s98
      %s116 = sphi 0, %s116
      %s118 = sphi 0, %s116
      %s119 = sphi 0, %s118
      %s133 = sphi 0, %s119
      %s137 = sphi 0, %s137
      %s139 = sphi 0, %s137
      %s140 = sphi 0, %s139
      %s154 = sphi 0, %s140
      %s158 = sphi 0, %s158
      %s160 = sphi 0, %s158
      %s161 = sphi 0, %s160
      %s175 = sphi 0, %s161
      %s179 = sphi 0, %s179
      %s181 = sphi 0, %s179
      %s182 = sphi 0, %s181
      %s196 = sphi 0, %s182
      %s200 = sphi 0, %s200
      %s202 = sphi 0, %s200
      %s203 = sphi 0, %s202
      %s217 = sphi 0, %s203
      %s221 = sphi 0, %s221
      %s223 = sphi 0, %s221
      %s224 = sphi 0, %s223
      %s238 = sphi 0, %s224
      %s244 = sphi 0, %s246
      %s247 = sphi 0, %s244
      %s248 = sphi 0, %s247
      %s264 = sphi 0, %s248
    $region4: #{tpu_custom_call.1} parent=1 // loop_header_branch
      %22 = sbr.rel (%p20) target = $region8
    $region5: #{tpu_custom_call.1} parent=1 // loop_body
      %s24 = ssub.s32 %s19, 1
      %s25 = ssub.s32 %s19, 2
      %s26 = sadd.s32 %s19, 1
      %s27 = ssub.s32 %s19, %s26
      %p28 = scmp.eq.s32.totalorder %s27, 0
      %s30 = sadd.s32 %s29, 1
      %s31 = scalar_select %p28, %s29, %s30
      %p34 = pneg %p28
      %p35 = scmp.eq.s32.totalorder %s19, 1
      %p36 = por %p34, %p35
      %p37 = scmp.ne.s32.totalorder %s29, %s32
      %p38 = scmp.eq.s32.totalorder %s19, 0
      %p39 = por %p37, %p38
      %p40 = scmp.ne.s32.totalorder %s29, %s32
      %p41 = scmp.eq.s32.totalorder %s24, 1
      %p42 = por %p40, %p41
      %p43 = scmp.ne.s32.totalorder %s32, %s33
      %p44 = scmp.eq.s32.totalorder %s24, 0
      %p45 = por %p43, %p44
      %p46 = scmp.ne.s32.totalorder %s32, %s33
      %p47 = scmp.eq.s32.totalorder %s25, 1
      %p48 = por %p46, %p47
      %p50 = scmp.ne.s32.totalorder %s33, %s49
      %p51 = scmp.eq.s32.totalorder %s25, 0
      %p52 = por %p50, %p51
      %s54 = sadd.s32 %s53, 1
      %p57 = scmp.eq.s32.totalorder %s19, 1
      %p58 = scmp.ne.s32.totalorder %s53, %s55
      %p59 = scmp.eq.s32.totalorder %s19, 0
      %p60 = por %p58, %p59
      %p61 = scmp.ne.s32.totalorder %s53, %s55
      %p62 = scmp.eq.s32.totalorder %s24, 1
      %p63 = por %p61, %p62
      %p64 = scmp.ne.s32.totalorder %s55, %s56
      %p65 = scmp.eq.s32.totalorder %s24, 0
      %p66 = por %p64, %p65
      %p67 = scmp.ne.s32.totalorder %s55, %s56
      %p68 = scmp.eq.s32.totalorder %s25, 1
      %p69 = por %p67, %p68
      %p71 = scmp.ne.s32.totalorder %s56, %s70
      %p72 = scmp.eq.s32.totalorder %s25, 0
      %p73 = por %p71, %p72
      %s75 = sadd.s32 %s74, 1
      %p78 = scmp.eq.s32.totalorder %s19, 1
      %p79 = scmp.ne.s32.totalorder %s74, %s76
      %p80 = scmp.eq.s32.totalorder %s19, 0
      %p81 = por %p79, %p80
      %p82 = scmp.ne.s32.totalorder %s74, %s76
      %p83 = scmp.eq.s32.totalorder %s24, 1
      %p84 = por %p82, %p83
      %p85 = scmp.ne.s32.totalorder %s76, %s77
      %p86 = scmp.eq.s32.totalorder %s24, 0
      %p87 = por %p85, %p86
      %p88 = scmp.ne.s32.totalorder %s76, %s77
      %p89 = scmp.eq.s32.totalorder %s25, 1
      %p90 = por %p88, %p89
      %p92 = scmp.ne.s32.totalorder %s77, %s91
      %p93 = scmp.eq.s32.totalorder %s25, 0
      %p94 = por %p92, %p93
      %s96 = sadd.s32 %s95, 1
      %p99 = scmp.eq.s32.totalorder %s19, 1
      %p100 = scmp.ne.s32.totalorder %s95, %s97
      %p101 = scmp.eq.s32.totalorder %s19, 0
      %p102 = por %p100, %p101
      %p103 = scmp.ne.s32.totalorder %s95, %s97
      %p104 = scmp.eq.s32.totalorder %s24, 1
      %p105 = por %p103, %p104
      %p106 = scmp.ne.s32.totalorder %s97, %s98
      %p107 = scmp.eq.s32.totalorder %s24, 0
      %p108 = por %p106, %p107
      %p109 = scmp.ne.s32.totalorder %s97, %s98
      %p110 = scmp.eq.s32.totalorder %s25, 1
      %p111 = por %p109, %p110
      %p113 = scmp.ne.s32.totalorder %s98, %s112
      %p114 = scmp.eq.s32.totalorder %s25, 0
      %p115 = por %p113, %p114
      %s117 = sadd.s32 %s116, 1
      %p120 = scmp.eq.s32.totalorder %s19, 1
      %p121 = scmp.ne.s32.totalorder %s116, %s118
      %p122 = scmp.eq.s32.totalorder %s19, 0
      %p123 = por %p121, %p122
      %p124 = scmp.ne.s32.totalorder %s116, %s118
      %p125 = scmp.eq.s32.totalorder %s24, 1
      %p126 = por %p124, %p125
      %p127 = scmp.ne.s32.totalorder %s118, %s119
      %p128 = scmp.eq.s32.totalorder %s24, 0
      %p129 = por %p127, %p128
      %p130 = scmp.ne.s32.totalorder %s118, %s119
      %p131 = scmp.eq.s32.totalorder %s25, 1
      %p132 = por %p130, %p131
      %p134 = scmp.ne.s32.totalorder %s119, %s133
      %p135 = scmp.eq.s32.totalorder %s25, 0
      %p136 = por %p134, %p135
      %s138 = sadd.s32 %s137, 1
      %p141 = scmp.eq.s32.totalorder %s19, 1
      %p142 = scmp.ne.s32.totalorder %s137, %s139
      %p143 = scmp.eq.s32.totalorder %s19, 0
      %p144 = por %p142, %p143
      %p145 = scmp.ne.s32.totalorder %s137, %s139
      %p146 = scmp.eq.s32.totalorder %s24, 1
      %p147 = por %p145, %p146
      %p148 = scmp.ne.s32.totalorder %s139, %s140
      %p149 = scmp.eq.s32.totalorder %s24, 0
      %p150 = por %p148, %p149
      %p151 = scmp.ne.s32.totalorder %s139, %s140
      %p152 = scmp.eq.s32.totalorder %s25, 1
      %p153 = por %p151, %p152
      %p155 = scmp.ne.s32.totalorder %s140, %s154
      %p156 = scmp.eq.s32.totalorder %s25, 0
      %p157 = por %p155, %p156
      %s159 = sadd.s32 %s158, 1
      %p162 = scmp.eq.s32.totalorder %s19, 1
      %p163 = scmp.ne.s32.totalorder %s158, %s160
      %p164 = scmp.eq.s32.totalorder %s19, 0
      %p165 = por %p163, %p164
      %p166 = scmp.ne.s32.totalorder %s158, %s160
      %p167 = scmp.eq.s32.totalorder %s24, 1
      %p168 = por %p166, %p167
      %p169 = scmp.ne.s32.totalorder %s160, %s161
      %p170 = scmp.eq.s32.totalorder %s24, 0
      %p171 = por %p169, %p170
      %p172 = scmp.ne.s32.totalorder %s160, %s161
      %p173 = scmp.eq.s32.totalorder %s25, 1
      %p174 = por %p172, %p173
      %p176 = scmp.ne.s32.totalorder %s161, %s175
      %p177 = scmp.eq.s32.totalorder %s25, 0
      %p178 = por %p176, %p177
      %s180 = sadd.s32 %s179, 1
      %p183 = scmp.eq.s32.totalorder %s19, 1
      %p184 = scmp.ne.s32.totalorder %s179, %s181
      %p185 = scmp.eq.s32.totalorder %s19, 0
      %p186 = por %p184, %p185
      %p187 = scmp.ne.s32.totalorder %s179, %s181
      %p188 = scmp.eq.s32.totalorder %s24, 1
      %p189 = por %p187, %p188
      %p190 = scmp.ne.s32.totalorder %s181, %s182
      %p191 = scmp.eq.s32.totalorder %s24, 0
      %p192 = por %p190, %p191
      %p193 = scmp.ne.s32.totalorder %s181, %s182
      %p194 = scmp.eq.s32.totalorder %s25, 1
      %p195 = por %p193, %p194
      %p197 = scmp.ne.s32.totalorder %s182, %s196
      %p198 = scmp.eq.s32.totalorder %s25, 0
      %p199 = por %p197, %p198
      %s201 = sadd.s32 %s200, 1
      %p204 = scmp.eq.s32.totalorder %s19, 1
      %p205 = scmp.ne.s32.totalorder %s200, %s202
      %p206 = scmp.eq.s32.totalorder %s19, 0
      %p207 = por %p205, %p206
      %p208 = scmp.ne.s32.totalorder %s200, %s202
      %p209 = scmp.eq.s32.totalorder %s24, 1
      %p210 = por %p208, %p209
      %p211 = scmp.ne.s32.totalorder %s202, %s203
      %p212 = scmp.eq.s32.totalorder %s24, 0
      %p213 = por %p211, %p212
      %p214 = scmp.ne.s32.totalorder %s202, %s203
      %p215 = scmp.eq.s32.totalorder %s25, 1
      %p216 = por %p214, %p215
      %p218 = scmp.ne.s32.totalorder %s203, %s217
      %p219 = scmp.eq.s32.totalorder %s25, 0
      %p220 = por %p218, %p219
      %s222 = sadd.s32 %s221, 1
      %p225 = scmp.eq.s32.totalorder %s19, 1
      %p226 = scmp.ne.s32.totalorder %s221, %s223
      %p227 = scmp.eq.s32.totalorder %s19, 0
      %p228 = por %p226, %p227
      %p229 = scmp.ne.s32.totalorder %s221, %s223
      %p230 = scmp.eq.s32.totalorder %s24, 1
      %p231 = por %p229, %p230
      %p232 = scmp.ne.s32.totalorder %s223, %s224
      %p233 = scmp.eq.s32.totalorder %s24, 0
      %p234 = por %p232, %p233
      %p235 = scmp.ne.s32.totalorder %s223, %s224
      %p236 = scmp.eq.s32.totalorder %s25, 1
      %p237 = por %p235, %p236
      %p239 = scmp.ne.s32.totalorder %s224, %s238
      %p240 = scmp.eq.s32.totalorder %s25, 0
      %p241 = por %p239, %p240
      %s242 = ssub.s32 %s19, %s26
      %p243 = scmp.eq.s32.totalorder %s242, 0
      %s245 = sadd.s32 %s244, 1
      %s246 = scalar_select %p243, %s244, %s245
      %p249 = pneg %p243
      %p250 = scmp.eq.s32.totalorder %s19, 1
      %p251 = por %p249, %p250
      %p252 = scmp.ne.s32.totalorder %s244, %s247
      %p253 = scmp.eq.s32.totalorder %s19, 0
      %p254 = por %p252, %p253
      %p255 = scmp.ne.s32.totalorder %s244, %s247
      %p256 = scmp.eq.s32.totalorder %s24, 1
      %p257 = por %p255, %p256
      %p258 = scmp.ne.s32.totalorder %s247, %s248
      %p259 = scmp.eq.s32.totalorder %s24, 0
      %p260 = por %p258, %p259
      %p261 = scmp.ne.s32.totalorder %s247, %s248
      %p262 = scmp.eq.s32.totalorder %s25, 1
      %p263 = por %p261, %p262
      %p265 = scmp.ne.s32.totalorder %s248, %s264
      %p266 = scmp.eq.s32.totalorder %s25, 0
      %p267 = por %p265, %p266
      %p268 = scmp.le.s32.totalorder 1, %s19
      %p269 = scmp.lt.s32.totalorder %s19, 3
      %p270 = pnand %p268, %p269
      %p271 = pneg %p270
      // Predicated region
      $region9: #{tpu_custom_call.1} parent=5 // pred_check
        _
      $region10: #{tpu_custom_call.1} parent=5 // pred_check_branch
        %273 = sbr.rel (%p270) target = $region12
      $region11: #{tpu_custom_call.1} parent=5 // pred_region
        %s274 = ssub.s32 %s19, 1
        // Predicated region
        $region13: #{tpu_custom_call.1} parent=11 // pred_check
          %p275 = pneg %p66
        $region14: #{tpu_custom_call.1} parent=11 // pred_check_branch
          %277 = sbr.rel (%p275) target = $region16
        $region15: #{tpu_custom_call.1} parent=11 // pred_region
          _
        $region16: #{tpu_custom_call.1} parent=11 // pred_fallthru
          _
        // Predicated region
        $region17: #{tpu_custom_call.1} parent=11 // pred_check
          %p278 = pneg %p87
        $region18: #{tpu_custom_call.1} parent=11 // pred_check_branch
          %280 = sbr.rel (%p278) target = $region20
        $region19: #{tpu_custom_call.1} parent=11 // pred_region
          _
        $region20: #{tpu_custom_call.1} parent=11 // pred_fallthru
          _
        // Predicated region
        $region21: #{tpu_custom_call.1} parent=11 // pred_check
          %p281 = pneg %p108
        $region22: #{tpu_custom_call.1} parent=11 // pred_check_branch
          %283 = sbr.rel (%p281) target = $region24
        $region23: #{tpu_custom_call.1} parent=11 // pred_region
          _
        $region24: #{tpu_custom_call.1} parent=11 // pred_fallthru
          _
        // Predicated region
        $region25: #{tpu_custom_call.1} parent=11 // pred_check
          %p284 = pneg %p129
        $region26: #{tpu_custom_call.1} parent=11 // pred_check_branch
          %286 = sbr.rel (%p284) target = $region28
        $region27: #{tpu_custom_call.1} parent=11 // pred_region
          _
        $region28: #{tpu_custom_call.1} parent=11 // pred_fallthru
          _
        // Predicated region
        $region29: #{tpu_custom_call.1} parent=11 // pred_check
          %p287 = pneg %p150
        $region30: #{tpu_custom_call.1} parent=11 // pred_check_branch
          %289 = sbr.rel (%p287) target = $region32
        $region31: #{tpu_custom_call.1} parent=11 // pred_region
          _
        $region32: #{tpu_custom_call.1} parent=11 // pred_fallthru
          _
        // Predicated region
        $region33: #{tpu_custom_call.1} parent=11 // pred_check
          %p290 = pneg %p171
        $region34: #{tpu_custom_call.1} parent=11 // pred_check_branch
          %292 = sbr.rel (%p290) target = $region36
        $region35: #{tpu_custom_call.1} parent=11 // pred_region
          _
        $region36: #{tpu_custom_call.1} parent=11 // pred_fallthru
          _
        // Predicated region
        $region37: #{tpu_custom_call.1} parent=11 // pred_check
          %p293 = pneg %p192
        $region38: #{tpu_custom_call.1} parent=11 // pred_check_branch
          %295 = sbr.rel (%p293) target = $region40
        $region39: #{tpu_custom_call.1} parent=11 // pred_region
          _
        $region40: #{tpu_custom_call.1} parent=11 // pred_fallthru
          _
        // Predicated region
        $region41: #{tpu_custom_call.1} parent=11 // pred_check
          %p296 = pneg %p213
        $region42: #{tpu_custom_call.1} parent=11 // pred_check_branch
          %298 = sbr.rel (%p296) target = $region44
        $region43: #{tpu_custom_call.1} parent=11 // pred_region
          _
        $region44: #{tpu_custom_call.1} parent=11 // pred_fallthru
          _
        // Predicated region
        $region45: #{tpu_custom_call.1} parent=11 // pred_check
          %p299 = pneg %p234
        $region46: #{tpu_custom_call.1} parent=11 // pred_check_branch
          %301 = sbr.rel (%p299) target = $region48
        $region47: #{tpu_custom_call.1} parent=11 // pred_region
          _
        $region48: #{tpu_custom_call.1} parent=11 // pred_fallthru
          _
      $region12: #{tpu_custom_call.1} parent=5 // pred_fallthru
        _
      %p302 = scmp.lt.s32.totalorder %s19, 2
      // Predicated region
      $region49: #{tpu_custom_call.1} parent=5 // pred_check
        %p303 = pneg %p302
      $region50: #{tpu_custom_call.1} parent=5 // pred_check_branch
        %305 = sbr.rel (%p303) target = $region52
      $region51: #{tpu_custom_call.1} parent=5 // pred_region
        // Predicated region
        $region53: #{tpu_custom_call.1} parent=51 // pred_check
          %p306 = pneg %p39
        $region54: #{tpu_custom_call.1} parent=51 // pred_check_branch
          %308 = sbr.rel (%p306) target = $region56
        $region55: #{tpu_custom_call.1} parent=51 // pred_region
          %s309 = smul.u32 8, %s19
          %s310 = ssub.s32 13, %s309
          %p311 = scmp.lt.s32.totalorder %s310, 8
          %s312 = scalar_select %p311, %s310, 8
          %s313 = smul.u32 4, %s312
          %p314 = scmp.lt.s32.totalorder %s309, 12
          %s315 = scalar_select %p314, %s309, 12
          %s316 = smul.addr %s315, 4
          %s317 = scalar_lea.vmem %s0, %s316
          %s318 = smul.u32 8, %s19
          %s319 = ssub.s32 13, %s318
          %p320 = scmp.lt.s32.totalorder %s319, 8
          %s321 = scalar_select %p320, %s319, 8
          %s322 = smul.u32 4, %s321
        $region56: #{tpu_custom_call.1} parent=51 // pred_fallthru
          _
      $region52: #{tpu_custom_call.1} parent=5 // pred_fallthru
        _
      %p323 = scmp.le.s32.totalorder 1, %s19
      %p324 = scmp.lt.s32.totalorder %s19, 3
      %p325 = pnand %p323, %p324
      %p326 = pneg %p325
      // Predicated region
      $region57: #{tpu_custom_call.1} parent=5 // pred_check
        _
      $region58: #{tpu_custom_call.1} parent=5 // pred_check_branch
        %328 = sbr.rel (%p325) target = $region60
      $region59: #{tpu_custom_call.1} parent=5 // pred_region
        %s329 = ssub.s32 %s19, 1
        %s330 = smul.u32 8, %s24
        %s331 = ssub.s32 13, %s330
        %p332 = scmp.lt.s32.totalorder %s331, 8
        %s333 = scalar_select %p332, %s331, 8
        %s334 = smul.u32 4, %s333
        %p335 = scmp.lt.s32.totalorder %s330, 12
        %s336 = scalar_select %p335, %s330, 12
        %s337 = smul.addr %s336, 4
        %s338 = scalar_lea.vmem %s0, %s337
        %p339 = pneg %p45
        %p340 = pneg %p42
        %p341 = pneg %p66
        %p342 = pneg %p63
        %p343 = pneg %p87
        %p344 = pneg %p84
        %p345 = pneg %p108
        %p346 = pneg %p105
        %p347 = pneg %p129
        %p348 = pneg %p126
        %p349 = pneg %p150
        %p350 = pneg %p147
        %p351 = pneg %p171
        %p352 = pneg %p168
        %p353 = pneg %p192
        %p354 = pneg %p189
        %p355 = pneg %p213
        %p356 = pneg %p210
        %p357 = pneg %p234
        %p358 = pneg %p231
        %p359 = pneg %p260
        %p360 = pneg %p257
        %s361 = sand.u32 %s247, 1
        %s362 = scalar_lea.sflag [#allocation3], %s361
        %s363 = sand.u32 %s247, 1
        %s364 = smul.addr %s363, 32
        %s365 = scalar_lea.vmem [#allocation2], %s364
        %s366 = smul.u32 8, %s24
        %s367 = ssub.s32 13, %s366
        %p368 = scmp.lt.s32.totalorder %s367, 8
        %s369 = scalar_select %p368, %s367, 8
        %s370 = smul.u32 4, %s369
        %p371 = scmp.lt.s32.totalorder %s366, 12
        %s372 = scalar_select %p371, %s366, 12
        %s373 = smul.addr %s372, 4
        %s374 = scalar_lea.vmem %s0, %s373
        %s375 = smul.u32 8, %s24
        %s376 = ssub.s32 13, %s375
        %p377 = scmp.lt.s32.totalorder %s376, 8
        %s378 = scalar_select %p377, %s376, 8
        %s379 = smul.u32 4, %s378
        %s380 = smul.u32 8, %s24
        %s381 = ssub.s32 13, %s380
        %p382 = scmp.lt.s32.totalorder %s381, 8
        %s383 = scalar_select %p382, %s381, 8
        %s384 = smul.u32 4, %s383
        %v386 = vld [vmem:[%s374] sm:$0xf]
        %v387 = vld [vmem:[%s374 + $0x4] sm:$0xf]
        %v388 = vld [vmem:[%s374 + $0x8] sm:$0xf]
        %v389 = vld [vmem:[%s374 + $0xc] sm:$0xf]
        %v390 = vld [vmem:[%s374 + $0x10] sm:$0xf]
        %v391 = vld [vmem:[%s374 + $0x14] sm:$0xf]
        %v392 = vld [vmem:[%s374 + $0x18] sm:$0xf]
        %v393 = vld [vmem:[%s374 + $0x1c] sm:$0xf]
        %v394 = vld [vmem:[%s1] sm:$0xf]
        %v395 = vld [vmem:[%s1 + $0x4] sm:$0xf]
        %v396 = vld [vmem:[%s2] sm:$0x1]
        %v397 = vunpack.c.l.bf16 %v396
        %v398 = vperm.slane %v397, 0
        %v407 = vunpack.c.l.b16 %v386
        %v408 = vunpack.c.l.b16 %v387
        %v409 = vunpack.c.l.b16 %v388
        %v410 = vunpack.c.l.b16 %v389
        %v411 = vunpack.c.l.b16 %v390
        %v412 = vunpack.c.l.b16 %v391
        %v413 = vunpack.c.l.b16 %v392
        %v414 = vunpack.c.l.b16 %v393
        %v415 = vpack.c.b16 %v408, %v407
        %v416 = vpack.c.b16 %v410, %v409
        %v417 = vpack.c.b16 %v412, %v411
        %v418 = vpack.c.b16 %v414, %v413
        %v421 = vunpack.c.l.b16 %v394
        %v422 = vunpack.c.l.b16 %v395
        %v423 = vpack.c.b16 %v422, %v421
        %vm425 = vcmask 130048
        %v427 = vsel %vm425, %v415, 0
        %v430 = vsel %vm425, %v416, 0
        %v433 = vsel %vm425, %v417, 0
        %v436 = vsel %vm425, %v418, 0
        %438 = vmatpush.bf16.msra.mxu0 0
        %439 = vmatpush.bf16.msra.mxu0 0
        %440 = vmatpush.bf16.msra.mxu0 0
        %441 = vmatpush.bf16.msra.mxu0 0
        %442 = vmatpush.bf16.msra.mxu0 0
        %443 = vmatpush.bf16.msra.mxu0 0
        %444 = vmatpush.bf16.msra.mxu0 0
        %445 = vmatpush.bf16.msra.mxu0 %v423
        %446 = vmatmul.bf16.gmra.mxu0 %v427
        %v447 = vpop.f32.mrf.mxu0
        %v448 = vadd.f32 %v398, %v447
        %v449 = vpop.f32.mrf.mxu0
        %v450 = vadd.f32 %v398, %v449
        %451 = vmatmul.bf16.gmra.mxu0 %v430
        %v452 = vpop.f32.mrf.mxu0
        %v453 = vadd.f32 %v398, %v452
        %v454 = vpop.f32.mrf.mxu0
        %v455 = vadd.f32 %v398, %v454
        %456 = vmatmul.bf16.gmra.mxu0 %v433
        %v457 = vpop.f32.mrf.mxu0
        %v458 = vadd.f32 %v398, %v457
        %v459 = vpop.f32.mrf.mxu0
        %v460 = vadd.f32 %v398, %v459
        %461 = vmatmul.bf16.gmra.mxu0 %v436
        %v462 = vpop.f32.mrf.mxu0
        %v463 = vadd.f32 %v398, %v462
        %v464 = vpop.f32.mrf.mxu0
        %v465 = vadd.f32 %v398, %v464
        %466 = vdwg.mxu0
        %v467 = vmax.f32 %v448, 0.0
        %v468 = vmax.f32 %v450, 0.0
        %v469 = vmax.f32 %v453, 0.0
        %v470 = vmax.f32 %v455, 0.0
        %v471 = vmax.f32 %v458, 0.0
        %v472 = vmax.f32 %v460, 0.0
        %v473 = vmax.f32 %v463, 0.0
        %v474 = vmax.f32 %v465, 0.0
        %v475 = vpack.c.bf16 %v468, %v467
        %v476 = vpack.c.bf16 %v470, %v469
        %v477 = vpack.c.bf16 %v472, %v471
        %v478 = vpack.c.bf16 %v474, %v473
        %v479 = vld [vmem:[%s3] sm:$0xf]
        %v480 = vld [vmem:[%s3 + $0x4] sm:$0xf]
        %v481 = vld [vmem:[%s3 + $0x8] sm:$0xf]
        %v482 = vld [vmem:[%s3 + $0xc] sm:$0xf]
        %v483 = vld [vmem:[%s3 + $0x10] sm:$0xf]
        %v484 = vld [vmem:[%s3 + $0x14] sm:$0xf]
        %v485 = vld [vmem:[%s3 + $0x18] sm:$0xf]
        %v486 = vld [vmem:[%s3 + $0x1c] sm:$0xf]
        %v487 = vld [vmem:[%s4] sm:$0x1]
        %v488 = vunpack.c.l.bf16 %v487
        %v489 = vperm.slane %v488, 0
        %v498 = vunpack.c.l.b16 %v479
        %v499 = vunpack.c.l.b16 %v480
        %v500 = vunpack.c.l.b16 %v481
        %v501 = vunpack.c.l.b16 %v482
        %v502 = vunpack.c.l.b16 %v483
        %v503 = vunpack.c.l.b16 %v484
        %v504 = vunpack.c.l.b16 %v485
        %v505 = vunpack.c.l.b16 %v486
        %v506 = vpack.c.b16 %v499, %v498
        %v507 = vpack.c.b16 %v501, %v500
        %v508 = vpack.c.b16 %v503, %v502
        %v509 = vpack.c.b16 %v505, %v504
        %vm514 = vcmask 523264
        %v516 = vsel %vm514, %v475, 0
        %v519 = vsel %vm514, %v476, 0
        %v522 = vsel %vm514, %v477, 0
        %v525 = vsel %vm514, %v478, 0
        %527 = vmatpush.bf16.msra.mxu0 0
        %528 = vmatpush.bf16.msra.mxu0 0
        %529 = vmatpush.bf16.msra.mxu0 0
        %530 = vmatpush.bf16.msra.mxu0 0
        %531 = vmatpush.bf16.msra.mxu0 %v509
        %532 = vmatpush.bf16.msra.mxu0 %v508
        %533 = vmatpush.bf16.msra.mxu0 %v507
        %534 = vmatpush.bf16.msra.mxu0 %v506
        %535 = vmatmul.bf16.gmra.mxu0 %v516
        %v536 = vpop.f32.mrf.mxu0
        %v537 = vadd.f32 %v489, %v536
        %v538 = vpop.f32.mrf.mxu0
        %v539 = vadd.f32 %v489, %v538
        %540 = vmatmul.bf16.gmra.mxu0 %v519
        %v541 = vpop.f32.mrf.mxu0
        %v542 = vadd.f32 %v489, %v541
        %v543 = vpop.f32.mrf.mxu0
        %v544 = vadd.f32 %v489, %v543
        %545 = vmatmul.bf16.gmra.mxu0 %v522
        %v546 = vpop.f32.mrf.mxu0
        %v547 = vadd.f32 %v489, %v546
        %v548 = vpop.f32.mrf.mxu0
        %v549 = vadd.f32 %v489, %v548
        %550 = vmatmul.bf16.gmra.mxu0 %v525
        %v551 = vpop.f32.mrf.mxu0
        %v552 = vadd.f32 %v489, %v551
        %v553 = vpop.f32.mrf.mxu0
        %v554 = vadd.f32 %v489, %v553
        %555 = vdwg.mxu0
        %v556 = vmax.f32 %v537, 0.0
        %v557 = vmax.f32 %v539, 0.0
        %v558 = vmax.f32 %v542, 0.0
        %v559 = vmax.f32 %v544, 0.0
        %v560 = vmax.f32 %v547, 0.0
        %v561 = vmax.f32 %v549, 0.0
        %v562 = vmax.f32 %v552, 0.0
        %v563 = vmax.f32 %v554, 0.0
        %v564 = vpack.c.bf16 %v557, %v556
        %v565 = vpack.c.bf16 %v559, %v558
        %v566 = vpack.c.bf16 %v561, %v560
        %v567 = vpack.c.bf16 %v563, %v562
        %v568 = vld [vmem:[%s5] sm:$0xf]
        %v569 = vld [vmem:[%s5 + $0x4] sm:$0xf]
        %v570 = vld [vmem:[%s5 + $0x8] sm:$0xf]
        %v571 = vld [vmem:[%s5 + $0xc] sm:$0xf]
        %v572 = vld [vmem:[%s5 + $0x10] sm:$0xf]
        %v573 = vld [vmem:[%s5 + $0x14] sm:$0xf]
        %v574 = vld [vmem:[%s5 + $0x18] sm:$0xf]
        %v575 = vld [vmem:[%s5 + $0x1c] sm:$0xf]
        %v576 = vld [vmem:[%s6] sm:$0x1]
        %v577 = vunpack.c.l.bf16 %v576
        %v578 = vperm.slane %v577, 0
        %v587 = vunpack.c.l.b16 %v568
        %v588 = vunpack.c.l.b16 %v569
        %v589 = vunpack.c.l.b16 %v570
        %v590 = vunpack.c.l.b16 %v571
        %v591 = vunpack.c.l.b16 %v572
        %v592 = vunpack.c.l.b16 %v573
        %v593 = vunpack.c.l.b16 %v574
        %v594 = vunpack.c.l.b16 %v575
        %v595 = vpack.c.b16 %v588, %v587
        %v596 = vpack.c.b16 %v590, %v589
        %v597 = vpack.c.b16 %v592, %v591
        %v598 = vpack.c.b16 %v594, %v593
        %v604 = vsel %vm514, %v564, 0
        %v607 = vsel %vm514, %v565, 0
        %v610 = vsel %vm514, %v566, 0
        %v613 = vsel %vm514, %v567, 0
        %615 = vmatpush.bf16.msra.mxu0 0
        %616 = vmatpush.bf16.msra.mxu0 0
        %617 = vmatpush.bf16.msra.mxu0 0
        %618 = vmatpush.bf16.msra.mxu0 0
        %619 = vmatpush.bf16.msra.mxu0 %v598
        %620 = vmatpush.bf16.msra.mxu0 %v597
        %621 = vmatpush.bf16.msra.mxu0 %v596
        %622 = vmatpush.bf16.msra.mxu0 %v595
        %623 = vmatmul.bf16.gmra.mxu0 %v604
        %v624 = vpop.f32.mrf.mxu0
        %v625 = vadd.f32 %v578, %v624
        %v626 = vpop.f32.mrf.mxu0
        %v627 = vadd.f32 %v578, %v626
        %628 = vmatmul.bf16.gmra.mxu0 %v607
        %v629 = vpop.f32.mrf.mxu0
        %v630 = vadd.f32 %v578, %v629
        %v631 = vpop.f32.mrf.mxu0
        %v632 = vadd.f32 %v578, %v631
        %633 = vmatmul.bf16.gmra.mxu0 %v610
        %v634 = vpop.f32.mrf.mxu0
        %v635 = vadd.f32 %v578, %v634
        %v636 = vpop.f32.mrf.mxu0
        %v637 = vadd.f32 %v578, %v636
        %638 = vmatmul.bf16.gmra.mxu0 %v613
        %v639 = vpop.f32.mrf.mxu0
        %v640 = vadd.f32 %v578, %v639
        %v641 = vpop.f32.mrf.mxu0
        %v642 = vadd.f32 %v578, %v641
        %643 = vdwg.mxu0
        %v644 = vmax.f32 %v625, 0.0
        %v645 = vmax.f32 %v627, 0.0
        %v646 = vmax.f32 %v630, 0.0
        %v647 = vmax.f32 %v632, 0.0
        %v648 = vmax.f32 %v635, 0.0
        %v649 = vmax.f32 %v637, 0.0
        %v650 = vmax.f32 %v640, 0.0
        %v651 = vmax.f32 %v642, 0.0
        %v652 = vpack.c.bf16 %v645, %v644
        %v653 = vpack.c.bf16 %v647, %v646
        %v654 = vpack.c.bf16 %v649, %v648
        %v655 = vpack.c.bf16 %v651, %v650
        %v656 = vld [vmem:[%s7] sm:$0xf]
        %v657 = vld [vmem:[%s7 + $0x4] sm:$0xf]
        %v658 = vld [vmem:[%s7 + $0x8] sm:$0xf]
        %v659 = vld [vmem:[%s7 + $0xc] sm:$0xf]
        %v660 = vld [vmem:[%s8] sm:$0x1]
        %v661 = vunpack.c.l.bf16 %v660
        %v662 = vperm.slane %v661, 0
        %v667 = vunpack.c.l.b16 %v656
        %v668 = vunpack.c.l.b16 %v657
        %v669 = vunpack.c.l.b16 %v658
        %v670 = vunpack.c.l.b16 %v659
        %v671 = vpack.c.b16 %v668, %v667
        %v672 = vpack.c.b16 %v670, %v669
        %vm675 = vcmask 261120
        %v677 = vsel %vm675, %v652, 0
        %v680 = vsel %vm675, %v653, 0
        %v683 = vsel %vm675, %v654, 0
        %v686 = vsel %vm675, %v655, 0
        %688 = vmatpush.bf16.msra.mxu0 0
        %689 = vmatpush.bf16.msra.mxu0 0
        %690 = vmatpush.bf16.msra.mxu0 0
        %691 = vmatpush.bf16.msra.mxu0 0
        %692 = vmatpush.bf16.msra.mxu0 0
        %693 = vmatpush.bf16.msra.mxu0 0
        %694 = vmatpush.bf16.msra.mxu0 %v672
        %695 = vmatpush.bf16.msra.mxu0 %v671
        %696 = vmatmul.bf16.gmra.mxu0 %v677
        %v697 = vpop.f32.mrf.mxu0
        %v698 = vadd.f32 %v662, %v697
        %v699 = vpop.f32.mrf.mxu0
        %v700 = vadd.f32 %v662, %v699
        %701 = vmatmul.bf16.gmra.mxu0 %v680
        %v702 = vpop.f32.mrf.mxu0
        %v703 = vadd.f32 %v662, %v702
        %v704 = vpop.f32.mrf.mxu0
        %v705 = vadd.f32 %v662, %v704
        %706 = vmatmul.bf16.gmra.mxu0 %v683
        %v707 = vpop.f32.mrf.mxu0
        %v708 = vadd.f32 %v662, %v707
        %v709 = vpop.f32.mrf.mxu0
        %v710 = vadd.f32 %v662, %v709
        %711 = vmatmul.bf16.gmra.mxu0 %v686
        %v712 = vpop.f32.mrf.mxu0
        %v713 = vadd.f32 %v662, %v712
        %v714 = vpop.f32.mrf.mxu0
        %v715 = vadd.f32 %v662, %v714
        %716 = vdwg.mxu0
        %v717 = vsub.f32 0.0, %v698
        %v718 = vsub.f32 0.0, %v700
        %v719 = vsub.f32 0.0, %v703
        %v720 = vsub.f32 0.0, %v705
        %v721 = vsub.f32 0.0, %v708
        %v722 = vsub.f32 0.0, %v710
        %v723 = vsub.f32 0.0, %v713
        %v724 = vsub.f32 0.0, %v715
        %v725 = vmul.f32 %v717, 1.442695
        %v726 = vpow.pop %v725
        %v727 = vmul.f32 %v718, 1.442695
        %v728 = vpow.pop %v727
        %v729 = vmul.f32 %v719, 1.442695
        %v730 = vpow.pop %v729
        %v731 = vmul.f32 %v720, 1.442695
        %v732 = vpow.pop %v731
        %v733 = vmul.f32 %v721, 1.442695
        %v734 = vpow.pop %v733
        %v735 = vmul.f32 %v722, 1.442695
        %v736 = vpow.pop %v735
        %v737 = vmul.f32 %v723, 1.442695
        %v738 = vpow.pop %v737
        %v739 = vmul.f32 %v724, 1.442695
        %v740 = vpow.pop %v739
        %v741 = vadd.f32 %v726, 1.0
        %v742 = vadd.f32 %v728, 1.0
        %v743 = vadd.f32 %v730, 1.0
        %v744 = vadd.f32 %v732, 1.0
        %v745 = vadd.f32 %v734, 1.0
        %v746 = vadd.f32 %v736, 1.0
        %v747 = vadd.f32 %v738, 1.0
        %v748 = vadd.f32 %v740, 1.0
        %v749 = vrcp.pop %v741
        %v750 = vrcp.pop %v742
        %v751 = vrcp.pop %v743
        %v752 = vrcp.pop %v744
        %v753 = vrcp.pop %v745
        %v754 = vrcp.pop %v746
        %v755 = vrcp.pop %v747
        %v756 = vrcp.pop %v748
        %v757 = vld [vmem:[%s9] sm:$0x1]
        %v758 = vsub.f32 %v749, %v698
        %v759 = vsub.f32 %v750, %v700
        %v760 = vsub.f32 %v751, %v703
        %v761 = vsub.f32 %v752, %v705
        %v762 = vsub.f32 %v753, %v708
        %v763 = vsub.f32 %v754, %v710
        %v764 = vsub.f32 %v755, %v713
        %v765 = vsub.f32 %v756, %v715
        %v767 = vperm.slane %v757, 0
        %v769 = vmul.f32 %v767, %v758
        %v770 = vmul.f32 %v767, %v759
        %v771 = vmul.f32 %v767, %v760
        %v772 = vmul.f32 %v767, %v761
        %v773 = vmul.f32 %v767, %v762
        %v774 = vmul.f32 %v767, %v763
        %v775 = vmul.f32 %v767, %v764
        %v776 = vmul.f32 %v767, %v765
        %v777 = vadd.f32 %v698, %v769
        %v778 = vadd.f32 %v700, %v770
        %v779 = vadd.f32 %v703, %v771
        %v780 = vadd.f32 %v705, %v772
        %v781 = vadd.f32 %v708, %v773
        %v782 = vadd.f32 %v710, %v774
        %v783 = vadd.f32 %v713, %v775
        %v784 = vadd.f32 %v715, %v776
        %v785 = vpack.c.bf16 %v777, %v777
        %v786 = vpack.c.bf16 %v778, %v778
        %v787 = vpack.c.bf16 %v779, %v779
        %v788 = vpack.c.bf16 %v780, %v780
        %v789 = vpack.c.bf16 %v781, %v781
        %v790 = vpack.c.bf16 %v782, %v782
        %v791 = vpack.c.bf16 %v783, %v783
        %v792 = vpack.c.bf16 %v784, %v784
        %793 = vst [vmem:[%s365] sm:$0xf] %v785
        %794 = vst [vmem:[%s365 + $0x4] sm:$0xf] %v786
        %795 = vst [vmem:[%s365 + $0x8] sm:$0xf] %v787
        %796 = vst [vmem:[%s365 + $0xc] sm:$0xf] %v788
        %797 = vst [vmem:[%s365 + $0x10] sm:$0xf] %v789
        %798 = vst [vmem:[%s365 + $0x14] sm:$0xf] %v790
        %799 = vst [vmem:[%s365 + $0x18] sm:$0xf] %v791
        %800 = vst [vmem:[%s365 + $0x1c] sm:$0xf] %v792
        %s801 = sand.u32 %s247, 1
        %s802 = scalar_lea.sflag [#allocation3], %s801
        %s803 = sand.u32 %s247, 1
        %s804 = smul.addr %s803, 32
        %s805 = scalar_lea.vmem [#allocation2], %s804
        // Predicated region
        $region61: #{tpu_custom_call.1} parent=59 // pred_check
          %p806 = pneg %p257
        $region62: #{tpu_custom_call.1} parent=59 // pred_check_branch
          %808 = sbr.rel (%p806) target = $region64
        $region63: #{tpu_custom_call.1} parent=59 // pred_region
          %s809 = smul.u32 8, %s24
          %s810 = ssub.s32 13, %s809
          %p811 = scmp.lt.s32.totalorder %s810, 8
          %s812 = scalar_select %p811, %s810, 8
          %s813 = smul.u32 4, %s812
          %s814 = ssub.s32 32, %s813
          %s815 = sshll.u32 %s814, 4
          %816 = vsyncadd %s802, %s815
          %p817 = scmp.ne.s32.totalorder 0, %s813
          %s818 = smul.addr %s809, 4
          %s819 = scalar_lea.hbm %s10, %s818
          %s820 = smul.u32 4, %s812
          %s821 = sshll.u32 %s805, 4
          %s822 = int_to_ptr.vmem [resolvable:$true] %s821
          %s823 = sshll.u32 %s819, 4
          %s824 = int_to_ptr.hbm [resolvable:$true] %s823
          %s825 = sshll.u32 %s820, 4
          %829 = dma.vmem_to_hbm [thread:$0]  (%p817), %s822, %s825, %s824, %s802, 64, 64, 4
        $region64: #{tpu_custom_call.1} parent=59 // pred_fallthru
          _
      $region60: #{tpu_custom_call.1} parent=5 // pred_fallthru
        _
      %p830 = scmp.le.s32.totalorder 2, %s19
      // Predicated region
      $region65: #{tpu_custom_call.1} parent=5 // pred_check
        %p831 = pneg %p830
      $region66: #{tpu_custom_call.1} parent=5 // pred_check_branch
        %833 = sbr.rel (%p831) target = $region68
      $region67: #{tpu_custom_call.1} parent=5 // pred_region
        %s834 = ssub.s32 %s19, 2
        // Predicated region
        $region69: #{tpu_custom_call.1} parent=67 // pred_check
          %p835 = pneg %p263
        $region70: #{tpu_custom_call.1} parent=67 // pred_check_branch
          %837 = sbr.rel (%p835) target = $region72
        $region71: #{tpu_custom_call.1} parent=67 // pred_region
          %s838 = sand.u32 %s248, 1
          %s839 = scalar_lea.sflag [#allocation3], %s838
          %s840 = sand.u32 %s248, 1
          %s841 = smul.addr %s840, 32
          %s842 = scalar_lea.vmem [#allocation2], %s841
          %844 = dma.done %s839, 512
        $region72: #{tpu_custom_call.1} parent=67 // pred_fallthru
          _
      $region68: #{tpu_custom_call.1} parent=5 // pred_fallthru
        _
    $region6: #{tpu_custom_call.1} parent=1 // loop_footer
      %s23 = sadd.s32 1, %s19
    $region7: #{tpu_custom_call.1} parent=1 // loop_footer_branch
      %18 = sbr.rel target = $region3
    $region8: #{tpu_custom_call.1} parent=1 // loop_exit
      _
    %845 = vsyncpa [#allocation3], 1
    %s846 = scalar_lea.sflag [#allocation3], 1
    %847 = vsyncpa %s846, 1

</llo_original>
